<compile_context>
chip_gen: v7x
topology: tpu7x:2x2x1
jax: 0.10.0
libtpu: 0.0.40
codegen_flags: <defaults>
</compile_context>

<pallas_src>
import functools

import jax
import jax.numpy as jnp
from jax.experimental import pallas as pl
from jax.experimental.pallas import tpu as pltpu

_LANE = 128


def _round_up(n, m):
    return ((n + m - 1) // m) * m


def _mlp_kernel(x_ref, w1_ref, b1_ref, w2_ref, b2_ref, w34_ref, b34_ref, o_ref):
    # fc1 + ReLU : bf16 MXU matmul, f32 accumulation, f32 elementwise (VPU).
    h = jnp.dot(x_ref[...], w1_ref[...], preferred_element_type=jnp.float32)
    h = jnp.maximum(h + b1_ref[...], 0.0)
    # fc2 + ReLU
    h = jnp.dot(h.astype(jnp.bfloat16), w2_ref[...],
                preferred_element_type=jnp.float32)
    h = jnp.maximum(h + b2_ref[...], 0.0)
    # fc3 + fc4 folded into one matmul (no ReLU in between); fused weight is
    # lane-padded to 128 so this is a full-width, unmasked store.
    out = jnp.dot(h.astype(jnp.bfloat16), w34_ref[...],
                  preferred_element_type=jnp.float32)
    o_ref[...] = (out + b34_ref[...]).astype(o_ref.dtype)


@functools.partial(jax.jit, static_argnames=("batch_tile",))
def linear_embedding_classifier_forward(x, params, *, batch_tile=256):
    """Forward pass of LinearEmbeddingClassifier.

    x: [B, embedding_size] float32 (the squeeze(0) glue for a leading
       singleton dim is done by the caller, mirroring the PyTorch forward).
    params: dict with w1..w4 stored as [in, out] and b1..b4 as [1, out]
            (transposed vs PyTorch nn.Linear so each layer is y = x @ W + b).
    """
    w1, b1 = params["w1"], params["b1"]
    w2, b2 = params["w2"], params["b2"]
    w3, b3 = params["w3"], params["b3"]
    w4, b4 = params["w4"], params["b4"]

    B, E = x.shape
    C = w4.shape[1]

    # Fold fc3/fc4 (exact: no nonlinearity between them), then lane-pad to 128.
    w34 = w3 @ w4                     # [64, C]
    b34 = b3 @ w4 + b4                # [1, C]
    C_pad = _round_up(max(C, 1), _LANE)
    w34 = jnp.pad(w34, ((0, 0), (0, C_pad - C)))
    b34 = jnp.pad(b34, ((0, 0), (0, C_pad - C)))

    # bf16 matmul operands (MXU-native on v5e/v6e/v7x); biases stay f32.
    w1_b = w1.astype(jnp.bfloat16)
    w2_b = w2.astype(jnp.bfloat16)
    w34_b = w34.astype(jnp.bfloat16)

    # Pick a batch tile: never larger than the (rounded-up) batch, and pad the
    # batch so the grid divides evenly.  16 keeps bf16 sublane packing happy.
    tile = min(batch_tile, _round_up(B, 16))
    B_pad = _round_up(B, tile)
    x_b = x.astype(jnp.bfloat16)
    if B_pad != B:
        x_b = jnp.pad(x_b, ((0, B_pad - B), (0, 0)))

    grid = (B_pad // tile,)

    def full(shape):
        # weight / bias blocks: the same (whole-array) block for every step,
        # so they stay resident in VMEM across the batch loop.
        return pl.BlockSpec(shape, lambda i: (0,) * len(shape))

    out = pl.pallas_call(
        _mlp_kernel,
        out_shape=jax.ShapeDtypeStruct((B_pad, C_pad), jnp.float32),
        grid_spec=pl.GridSpec(
            grid=grid,
            in_specs=[
                pl.BlockSpec((tile, E), lambda i: (i, 0)),   # x tile
                full(w1_b.shape), full(b1.shape),
                full(w2_b.shape), full(b2.shape),
                full(w34_b.shape), full(b34.shape),
            ],
            out_specs=pl.BlockSpec((tile, C_pad), lambda i: (i, 0)),
        ),
        compiler_params=pltpu.CompilerParams(
            dimension_semantics=("parallel",)),
    )(x_b, w1_b, b1, w2_b, b2, w34_b, b34)

    return out[:B, :C]


def init_params(key, embedding_size, num_classes):
    """Deterministic synthetic parameters matching nn.Linear shapes.

    PyTorch nn.Linear(in, out) has weight [out, in]; we store the transpose
    [in, out] so the kernel computes x @ W + b.
    """
    dims = [(embedding_size, 128), (128, 64), (64, 32), (32, num_classes)]
    params = {}
    for idx, (din, dout) in enumerate(dims, start=1):
        key, kw, kb = jax.random.split(key, 3)
        bound = 1.0 / (din ** 0.5)  # PyTorch default uniform init bound
        params[f"w{idx}"] = jax.random.uniform(
            kw, (din, dout), jnp.float32, minval=-bound, maxval=bound)
        params[f"b{idx}"] = jax.random.uniform(
            kb, (1, dout), jnp.float32, minval=-bound, maxval=bound)
    return params


def _reference_forward(x, params):
    h = jnp.maximum(x @ params["w1"] + params["b1"], 0.0)
    h = jnp.maximum(h @ params["w2"] + params["b2"], 0.0)
    h = h @ params["w3"] + params["b3"]
    return h @ params["w4"] + params["b4"]


if __name__ == "__main__":
    embedding_size = 32
    num_classes = 10
    batch = 8

    key = jax.random.PRNGKey(0)
    key, kx = jax.random.split(key)
    params = init_params(key, embedding_size, num_classes)

    # Example input already at embedding size (so the embedding_model branch
    # of the PyTorch forward is not taken).
    # TODO(synk): embedding_model.get_embedding_from_signal has no defined
    # computation in the reference module, so only the embedding-sized path
    # is implemented.
    x = jax.random.normal(kx, (1, batch, embedding_size), jnp.float32)

    # Glue mirroring the PyTorch forward: squeeze a leading singleton dim.
    if x.ndim == 3 and x.shape[0] == 1:
        x = jnp.squeeze(x, axis=0)

    out = jax.block_until_ready(linear_embedding_classifier_forward(x, params))
    ref = _reference_forward(x, params)
    assert out.shape == (batch, num_classes)
    # bf16 matmul operands + fc3/fc4 fold => small rounding vs f32 reference.
    assert jnp.allclose(out, ref, atol=5e-2, rtol=5e-2), \
        float(jnp.max(jnp.abs(out - ref)))

    # Ragged batch + multi-step grid path (wrapper pads the batch internally).
    key, kx2 = jax.random.split(key)
    x2 = jax.random.normal(kx2, (40, embedding_size), jnp.float32)
    out2 = jax.block_until_ready(
        linear_embedding_classifier_forward(x2, params, batch_tile=16))
    ref2 = _reference_forward(x2, params)
    assert out2.shape == (40, num_classes)
    assert jnp.allclose(out2, ref2, atol=5e-2, rtol=5e-2)

    print("KERNEL_OK")
</pallas_src>

<mosaic_0001>
module attributes {stable_mosaic.version = 11 : i64} {
  func.func @_mlp_kernel(%arg0: i32, %arg1: memref<16x32xbf16, #tpu.memory_space<vmem>>, %arg2: memref<32x128xbf16, #tpu.memory_space<vmem>>, %arg3: memref<1x128xf32, #tpu.memory_space<vmem>>, %arg4: memref<128x64xbf16, #tpu.memory_space<vmem>>, %arg5: memref<1x64xf32, #tpu.memory_space<vmem>>, %arg6: memref<64x128xbf16, #tpu.memory_space<vmem>>, %arg7: memref<1x128xf32, #tpu.memory_space<vmem>>, %arg8: memref<16x128xf32, #tpu.memory_space<vmem>>) attributes {dimension_semantics = [#tpu.dimension_semantics<parallel>], iteration_bounds = array<i64: 1>, scalar_prefetch = 0 : i64, scratch_operands = 0 : i64, tpu.core_type = #tpu.core_type<tc>, window_params = [{transform_indices = @transform_0, window_bounds = array<i64: 16, 32>}, {pipeline_mode = #tpu.pipeline_mode<synchronous>, transform_indices = @transform_1, window_bounds = array<i64: 32, 128>}, {pipeline_mode = #tpu.pipeline_mode<synchronous>, transform_indices = @transform_2, window_bounds = array<i64: 1, 128>}, {pipeline_mode = #tpu.pipeline_mode<synchronous>, transform_indices = @transform_3, window_bounds = array<i64: 128, 64>}, {pipeline_mode = #tpu.pipeline_mode<synchronous>, transform_indices = @transform_4, window_bounds = array<i64: 1, 64>}, {pipeline_mode = #tpu.pipeline_mode<synchronous>, transform_indices = @transform_5, window_bounds = array<i64: 64, 128>}, {pipeline_mode = #tpu.pipeline_mode<synchronous>, transform_indices = @transform_6, window_bounds = array<i64: 1, 128>}, {transform_indices = @transform_7, window_bounds = array<i64: 16, 128>}]} {
    %c0 = arith.constant 0 : index
    %c0_0 = arith.constant 0 : index
    %0 = vector.load %arg1[%c0, %c0_0] : memref<16x32xbf16, #tpu.memory_space<vmem>>, vector<16x32xbf16>
    %c0_1 = arith.constant 0 : index
    %c0_2 = arith.constant 0 : index
    %1 = vector.load %arg2[%c0_1, %c0_2] : memref<32x128xbf16, #tpu.memory_space<vmem>>, vector<32x128xbf16>
    %cst = arith.constant dense<0.000000e+00> : vector<16x128xf32>
    %2 = tpu.matmul %0, %1, %cst {dimension_numbers = #tpu.dot_dimension_numbers<[1], [0], [0], [1], [0, 0, 1, 1], [], []>} : vector<16x32xbf16>, vector<32x128xbf16>, vector<16x128xf32> -> vector<16x128xf32>
    %c0_3 = arith.constant 0 : index
    %c0_4 = arith.constant 0 : index
    %3 = vector.load %arg3[%c0_3, %c0_4] : memref<1x128xf32, #tpu.memory_space<vmem>>, vector<1x128xf32>
    %4 = vector.broadcast %3 : vector<1x128xf32> to vector<16x128xf32>
    %5 = arith.addf %2, %4 : vector<16x128xf32>
    %cst_5 = arith.constant 0.000000e+00 : f32
    %6 = vector.broadcast %cst_5 : f32 to vector<16x128xf32>
    %7 = arith.maximumf %5, %6 : vector<16x128xf32>
    %8 = arith.truncf %7 : vector<16x128xf32> to vector<16x128xbf16>
    %c0_6 = arith.constant 0 : index
    %c0_7 = arith.constant 0 : index
    %9 = vector.load %arg4[%c0_6, %c0_7] : memref<128x64xbf16, #tpu.memory_space<vmem>>, vector<128x64xbf16>
    %cst_8 = arith.constant dense<0.000000e+00> : vector<16x64xf32>
    %10 = tpu.matmul %8, %9, %cst_8 {dimension_numbers = #tpu.dot_dimension_numbers<[1], [0], [0], [1], [0, 0, 1, 1], [], []>} : vector<16x128xbf16>, vector<128x64xbf16>, vector<16x64xf32> -> vector<16x64xf32>
    %c0_9 = arith.constant 0 : index
    %c0_10 = arith.constant 0 : index
    %11 = vector.load %arg5[%c0_9, %c0_10] : memref<1x64xf32, #tpu.memory_space<vmem>>, vector<1x64xf32>
    %12 = vector.broadcast %11 : vector<1x64xf32> to vector<16x64xf32>
    %13 = arith.addf %10, %12 : vector<16x64xf32>
    %cst_11 = arith.constant 0.000000e+00 : f32
    %14 = vector.broadcast %cst_11 : f32 to vector<16x64xf32>
    %15 = arith.maximumf %13, %14 : vector<16x64xf32>
    %16 = arith.truncf %15 : vector<16x64xf32> to vector<16x64xbf16>
    %c0_12 = arith.constant 0 : index
    %c0_13 = arith.constant 0 : index
    %17 = vector.load %arg6[%c0_12, %c0_13] : memref<64x128xbf16, #tpu.memory_space<vmem>>, vector<64x128xbf16>
    %cst_14 = arith.constant dense<0.000000e+00> : vector<16x128xf32>
    %18 = tpu.matmul %16, %17, %cst_14 {dimension_numbers = #tpu.dot_dimension_numbers<[1], [0], [0], [1], [0, 0, 1, 1], [], []>} : vector<16x64xbf16>, vector<64x128xbf16>, vector<16x128xf32> -> vector<16x128xf32>
    %c0_15 = arith.constant 0 : index
    %c0_16 = arith.constant 0 : index
    %19 = vector.load %arg7[%c0_15, %c0_16] : memref<1x128xf32, #tpu.memory_space<vmem>>, vector<1x128xf32>
    %20 = vector.broadcast %19 : vector<1x128xf32> to vector<16x128xf32>
    %21 = arith.addf %18, %20 : vector<16x128xf32>
    %c0_17 = arith.constant 0 : index
    %c0_18 = arith.constant 0 : index
    %22 = vector.load %arg8[%c0_17, %c0_18] : memref<16x128xf32, #tpu.memory_space<vmem>>, vector<16x128xf32>
    tpu.vector_store %arg8[%c0_17, %c0_18], %21 {strides = array<i32>} : memref<16x128xf32, #tpu.memory_space<vmem>>, vector<16x128xf32>,
    return
  }
  func.func @transform_0(%arg0: i32) -> (i32, i32) {
    %c0_i32 = arith.constant 0 : i32
    %c0_i32_0 = arith.constant 0 : i32
    return %arg0, %c0_i32 : i32, i32
  }
  func.func @transform_1(%arg0: i32) -> (i32, i32) {
    %c0_i32 = arith.constant 0 : i32
    %c0_i32_0 = arith.constant 0 : i32
    %c0_i32_1 = arith.constant 0 : i32
    return %c0_i32, %c0_i32_0 : i32, i32
  }
  func.func @transform_2(%arg0: i32) -> (i32, i32) {
    %c0_i32 = arith.constant 0 : i32
    %c0_i32_0 = arith.constant 0 : i32
    %c0_i32_1 = arith.constant 0 : i32
    return %c0_i32, %c0_i32_0 : i32, i32
  }
  func.func @transform_3(%arg0: i32) -> (i32, i32) {
    %c0_i32 = arith.constant 0 : i32
    %c0_i32_0 = arith.constant 0 : i32
    %c0_i32_1 = arith.constant 0 : i32
    return %c0_i32, %c0_i32_0 : i32, i32
  }
  func.func @transform_4(%arg0: i32) -> (i32, i32) {
    %c0_i32 = arith.constant 0 : i32
    %c0_i32_0 = arith.constant 0 : i32
    %c0_i32_1 = arith.constant 0 : i32
    return %c0_i32, %c0_i32_0 : i32, i32
  }
  func.func @transform_5(%arg0: i32) -> (i32, i32) {
    %c0_i32 = arith.constant 0 : i32
    %c0_i32_0 = arith.constant 0 : i32
    %c0_i32_1 = arith.constant 0 : i32
    return %c0_i32, %c0_i32_0 : i32, i32
  }
  func.func @transform_6(%arg0: i32) -> (i32, i32) {
    %c0_i32 = arith.constant 0 : i32
    %c0_i32_0 = arith.constant 0 : i32
    %c0_i32_1 = arith.constant 0 : i32
    return %c0_i32, %c0_i32_0 : i32, i32
  }
  func.func @transform_7(%arg0: i32) -> (i32, i32) {
    %c0_i32 = arith.constant 0 : i32
    %c0_i32_0 = arith.constant 0 : i32
    return %arg0, %c0_i32 : i32, i32
  }
}

</mosaic_0001>

<llo_original>
// kernel: linear_embedding_classifier_forward.1
$region0: #{linear_embedding_classifier_forward.1}
  #allocation0 [shape = 'u32[]', space=smem, size = 0x4, offset = 0x4, fixed_abs, tag = 'smem constant byte address 0x4 - core index']
  #allocation1 [shape = 'u32[144,128]{1,0:T(1,128)}', space=vmem, size = 0x12000, scoped, tag = 'internal scratch']
  %s0 = inlined_call_operand.vmem [shape: bf16[16,32], index: 0, kind: input, shape index: {}]
  %s1 = inlined_call_operand.vmem [shape: bf16[32,128], index: 1, kind: input, shape index: {}]
  %s2 = inlined_call_operand.vmem [shape: f32[1,128], index: 2, kind: input, shape index: {}]
  %s3 = inlined_call_operand.vmem [shape: bf16[128,64], index: 3, kind: input, shape index: {}]
  %s4 = inlined_call_operand.vmem [shape: f32[1,64], index: 4, kind: input, shape index: {}]
  %s5 = inlined_call_operand.vmem [shape: bf16[64,128], index: 5, kind: input, shape index: {}]
  %s6 = inlined_call_operand.vmem [shape: f32[1,128], index: 6, kind: input, shape index: {}]
  %s7 = inlined_call_operand.vmem [shape: f32[16,128], index: 7, kind: output, shape index: {}]
  %s8 = sld [smem:[#allocation0]]
  $region38: #{linear_embedding_classifier_forward.1} parent=0
    _
  %s10 = ssub.s32 1, %s8
  %s11 = scalar_select 0, %s10, %s8
  // Predicated region
  $region2: #{linear_embedding_classifier_forward.1} parent=0 // pred_check
    _
  $region3: #{linear_embedding_classifier_forward.1} parent=0 // pred_check_branch
    %13 = sbr.rel (0) target = $region5
  $region4: #{linear_embedding_classifier_forward.1} parent=0 // pred_region
    _
  $region5: #{linear_embedding_classifier_forward.1} parent=0 // pred_fallthru
    _
  // Predicated region
  $region6: #{linear_embedding_classifier_forward.1} parent=0 // pred_check
    _
  $region7: #{linear_embedding_classifier_forward.1} parent=0 // pred_check_branch
    %15 = sbr.rel (0) target = $region9
  $region8: #{linear_embedding_classifier_forward.1} parent=0 // pred_region
    _
  $region9: #{linear_embedding_classifier_forward.1} parent=0 // pred_fallthru
    _
  // Predicated region
  $region10: #{linear_embedding_classifier_forward.1} parent=0 // pred_check
    _
  $region11: #{linear_embedding_classifier_forward.1} parent=0 // pred_check_branch
    %17 = sbr.rel (0) target = $region13
  $region12: #{linear_embedding_classifier_forward.1} parent=0 // pred_region
    _
  $region13: #{linear_embedding_classifier_forward.1} parent=0 // pred_fallthru
    _
  // Predicated region
  $region14: #{linear_embedding_classifier_forward.1} parent=0 // pred_check
    _
  $region15: #{linear_embedding_classifier_forward.1} parent=0 // pred_check_branch
    %19 = sbr.rel (0) target = $region17
  $region16: #{linear_embedding_classifier_forward.1} parent=0 // pred_region
    _
  $region17: #{linear_embedding_classifier_forward.1} parent=0 // pred_fallthru
    _
  // Predicated region
  $region18: #{linear_embedding_classifier_forward.1} parent=0 // pred_check
    _
  $region19: #{linear_embedding_classifier_forward.1} parent=0 // pred_check_branch
    %21 = sbr.rel (0) target = $region21
  $region20: #{linear_embedding_classifier_forward.1} parent=0 // pred_region
    _
  $region21: #{linear_embedding_classifier_forward.1} parent=0 // pred_fallthru
    _
  // Predicated region
  $region22: #{linear_embedding_classifier_forward.1} parent=0 // pred_check
    _
  $region23: #{linear_embedding_classifier_forward.1} parent=0 // pred_check_branch
    %23 = sbr.rel (0) target = $region25
  $region24: #{linear_embedding_classifier_forward.1} parent=0 // pred_region
    _
  $region25: #{linear_embedding_classifier_forward.1} parent=0 // pred_fallthru
    _
  // Predicated region
  $region26: #{linear_embedding_classifier_forward.1} parent=0 // pred_check
    _
  $region27: #{linear_embedding_classifier_forward.1} parent=0 // pred_check_branch
    %25 = sbr.rel (0) target = $region29
  $region28: #{linear_embedding_classifier_forward.1} parent=0 // pred_region
    _
  $region29: #{linear_embedding_classifier_forward.1} parent=0 // pred_fallthru
    _
  %v27 = vld [vmem:[%s0] sm:$0xf]
  %v28 = vld [vmem:[%s0 + $0x4] sm:$0xf]
  %v29 = vld [vmem:[%s1] sm:$0xf]
  %v30 = vld [vmem:[%s1 + $0x4] sm:$0xf]
  %v31 = vld [vmem:[%s1 + $0x8] sm:$0xf]
  %v32 = vld [vmem:[%s1 + $0xc] sm:$0xf]
  %v33 = vld [vmem:[%s2] sm:$0x1]
  %v35 = vlaneseq
  %v36 = vshrl.u32 %v35, 7
  %v37 = vsub.s32 0, %v36
  %v38 = vrot.slane %v33, %v37
  %v42 = vunpack.c.l.b16 %v27
  %v43 = vunpack.c.l.b16 %v28
  %v44 = vpack.c.b16 %v43, %v42
  %v49 = vunpack.c.l.b16 %v29
  %v50 = vunpack.c.l.b16 %v30
  %v51 = vunpack.c.l.b16 %v31
  %v52 = vunpack.c.l.b16 %v32
  %v53 = vpack.c.b16 %v50, %v49
  %v54 = vpack.c.b16 %v52, %v51
  %vm57 = vcmask 261120
  %v59 = vsel %vm57, %v44, 0
  %61 = vmatprep.subr.bf16.mxu0 0
  %62 = vmatpush1.bf16.msra.mxu0 %v53
  %63 = vmatprep.subr.bf16.mxu0 0
  %64 = vmatpush1.bf16.msra.mxu0 %v54
  %65 = vmatprep.subr.bf16.mxu0 0
  %66 = vmatpush1.bf16.msra.mxu0 0
  %67 = vmatprep.subr.bf16.mxu0 0
  %68 = vmatpush1.bf16.msra.mxu0 0
  %69 = vmatprep.subr.bf16.mxu0 0
  %70 = vmatpush1.bf16.msra.mxu0 0
  %71 = vmatprep.subr.bf16.mxu0 0
  %72 = vmatpush1.bf16.msra.mxu0 0
  %73 = vmatprep.subr.bf16.mxu0 0
  %74 = vmatpush1.bf16.msra.mxu0 0
  %75 = vmatprep.subr.bf16.mxu0 0
  %76 = vmatpush1.bf16.msra.mxu0 0
  %77 = vmatprep.subr.bf16.mxu0 0
  %78 = vmatpush1.bf16.msra.mxu0 0
  %79 = vmatprep.subr.bf16.mxu0 0
  %80 = vmatpush1.bf16.msra.mxu0 0
  %81 = vmatprep.subr.bf16.mxu0 0
  %82 = vmatpush1.bf16.msra.mxu0 0
  %83 = vmatprep.subr.bf16.mxu0 0
  %84 = vmatpush1.bf16.msra.mxu0 0
  %85 = vmatprep.subr.bf16.mxu0 0
  %86 = vmatpush1.bf16.msra.mxu0 0
  %87 = vmatprep.subr.bf16.mxu0 0
  %88 = vmatpush1.bf16.msra.mxu0 0
  %89 = vmatprep.subr.bf16.mxu0 0
  %90 = vmatpush1.bf16.msra.mxu0 0
  %91 = vmatprep.subr.bf16.mxu0 0
  %92 = vmatpush1.bf16.msra.mxu0 0
  %93 = vmatprep.mubr.bf16.mxu0 0
  %94 = vmatmul.mubr.bf16.gmra.mrb[0].mxu0 %v59
  %v95 = vpop.f32.mrb[0].mxu0
  %v96 = vadd.f32 %v38, %v95
  %v97 = vpop.f32.mrb[0].mxu0
  %v98 = vpop.f32.mrb[0].mxu0
  %v99 = vadd.f32 %v38, %v98
  %v100 = vpop.f32.mrb[0].mxu0
  %101 = vdwg.mxu0
  %v102 = vmax.f32 %v96, 0.0
  %v103 = vmax.f32 %v99, 0.0
  %v104 = vpack.c.bf16 %v103, %v102
  %v105 = vld [vmem:[%s3] sm:$0xf]
  %v106 = vld [vmem:[%s3 + $0x4] sm:$0xf]
  %v107 = vld [vmem:[%s3 + $0x8] sm:$0xf]
  %v108 = vld [vmem:[%s3 + $0xc] sm:$0xf]
  %v109 = vld [vmem:[%s3 + $0x10] sm:$0xf]
  %v110 = vld [vmem:[%s3 + $0x14] sm:$0xf]
  %v111 = vld [vmem:[%s3 + $0x18] sm:$0xf]
  %v112 = vld [vmem:[%s3 + $0x1c] sm:$0xf]
  %v113 = vld [vmem:[%s3 + $0x20] sm:$0xf]
  %v114 = vld [vmem:[%s3 + $0x24] sm:$0xf]
  %v115 = vld [vmem:[%s3 + $0x28] sm:$0xf]
  %v116 = vld [vmem:[%s3 + $0x2c] sm:$0xf]
  %v117 = vld [vmem:[%s3 + $0x30] sm:$0xf]
  %v118 = vld [vmem:[%s3 + $0x34] sm:$0xf]
  %v119 = vld [vmem:[%s3 + $0x38] sm:$0xf]
  %v120 = vld [vmem:[%s3 + $0x3c] sm:$0xf]
  %v121 = vld [vmem:[%s4] sm:$0x1]
  %v123 = vlaneseq
  %v124 = vshrl.u32 %v123, 7
  %v125 = vsub.s32 0, %v124
  %v126 = vrot.slane %v121, %v125
  %v144 = vunpack.c.l.b16 %v105
  %v145 = vunpack.c.l.b16 %v106
  %v146 = vunpack.c.l.b16 %v107
  %v147 = vunpack.c.l.b16 %v108
  %v148 = vunpack.c.l.b16 %v109
  %v149 = vunpack.c.l.b16 %v110
  %v150 = vunpack.c.l.b16 %v111
  %v151 = vunpack.c.l.b16 %v112
  %v152 = vunpack.c.l.b16 %v113
  %v153 = vunpack.c.l.b16 %v114
  %v154 = vunpack.c.l.b16 %v115
  %v155 = vunpack.c.l.b16 %v116
  %v156 = vunpack.c.l.b16 %v117
  %v157 = vunpack.c.l.b16 %v118
  %v158 = vunpack.c.l.b16 %v119
  %v159 = vunpack.c.l.b16 %v120
  %v160 = vpack.c.b16 %v145, %v144
  %v161 = vpack.c.b16 %v147, %v146
  %v162 = vpack.c.b16 %v149, %v148
  %v163 = vpack.c.b16 %v151, %v150
  %v164 = vpack.c.b16 %v153, %v152
  %v165 = vpack.c.b16 %v155, %v154
  %v166 = vpack.c.b16 %v157, %v156
  %v167 = vpack.c.b16 %v159, %v158
  %176 = vmatprep.subr.bf16.mxu0 0
  %177 = vmatpush1.bf16.msra.mxu0 %v160
  %178 = vmatprep.subr.bf16.mxu0 0
  %179 = vmatpush1.bf16.msra.mxu0 %v161
  %180 = vmatprep.subr.bf16.mxu0 0
  %181 = vmatpush1.bf16.msra.mxu0 %v162
  %182 = vmatprep.subr.bf16.mxu0 0
  %183 = vmatpush1.bf16.msra.mxu0 %v163
  %184 = vmatprep.subr.bf16.mxu0 0
  %185 = vmatpush1.bf16.msra.mxu0 %v164
  %186 = vmatprep.subr.bf16.mxu0 0
  %187 = vmatpush1.bf16.msra.mxu0 %v165
  %188 = vmatprep.subr.bf16.mxu0 0
  %189 = vmatpush1.bf16.msra.mxu0 %v166
  %190 = vmatprep.subr.bf16.mxu0 0
  %191 = vmatpush1.bf16.msra.mxu0 %v167
  %192 = vmatprep.subr.bf16.mxu0 0
  %193 = vmatpush1.bf16.msra.mxu0 0
  %194 = vmatprep.subr.bf16.mxu0 0
  %195 = vmatpush1.bf16.msra.mxu0 0
  %196 = vmatprep.subr.bf16.mxu0 0
  %197 = vmatpush1.bf16.msra.mxu0 0
  %198 = vmatprep.subr.bf16.mxu0 0
  %199 = vmatpush1.bf16.msra.mxu0 0
  %200 = vmatprep.subr.bf16.mxu0 0
  %201 = vmatpush1.bf16.msra.mxu0 0
  %202 = vmatprep.subr.bf16.mxu0 0
  %203 = vmatpush1.bf16.msra.mxu0 0
  %204 = vmatprep.subr.bf16.mxu0 0
  %205 = vmatpush1.bf16.msra.mxu0 0
  %206 = vmatprep.subr.bf16.mxu0 0
  %207 = vmatpush1.bf16.msra.mxu0 0
  %208 = vmatprep.mubr.bf16.mxu0 0
  %209 = vmatmul.mubr.bf16.gmra.mrb[0].mxu0 %v104
  %v210 = vpop.f32.mrb[0].mxu0
  %v211 = vadd.f32 %v126, %v210
  %v212 = vpop.f32.mrb[0].mxu0
  %v213 = vpop.f32.mrb[0].mxu0
  %v214 = vadd.f32 %v126, %v213
  %v215 = vpop.f32.mrb[0].mxu0
  %216 = vdwg.mxu0
  %v217 = vmax.f32 %v211, 0.0
  %v218 = vmax.f32 %v214, 0.0
  %v219 = vpack.c.bf16 %v218, %v217
  %v220 = vld [vmem:[%s5] sm:$0xf]
  %v221 = vld [vmem:[%s5 + $0x4] sm:$0xf]
  %v222 = vld [vmem:[%s5 + $0x8] sm:$0xf]
  %v223 = vld [vmem:[%s5 + $0xc] sm:$0xf]
  %v224 = vld [vmem:[%s5 + $0x10] sm:$0xf]
  %v225 = vld [vmem:[%s5 + $0x14] sm:$0xf]
  %v226 = vld [vmem:[%s5 + $0x18] sm:$0xf]
  %v227 = vld [vmem:[%s5 + $0x1c] sm:$0xf]
  %v228 = vld [vmem:[%s6] sm:$0x1]
  %v230 = vlaneseq
  %v231 = vshrl.u32 %v230, 7
  %v232 = vsub.s32 0, %v231
  %v233 = vrot.slane %v228, %v232
  %v243 = vunpack.c.l.b16 %v220
  %v244 = vunpack.c.l.b16 %v221
  %v245 = vunpack.c.l.b16 %v222
  %v246 = vunpack.c.l.b16 %v223
  %v247 = vunpack.c.l.b16 %v224
  %v248 = vunpack.c.l.b16 %v225
  %v249 = vunpack.c.l.b16 %v226
  %v250 = vunpack.c.l.b16 %v227
  %v251 = vpack.c.b16 %v244, %v243
  %v252 = vpack.c.b16 %v246, %v245
  %v253 = vpack.c.b16 %v248, %v247
  %v254 = vpack.c.b16 %v250, %v249
  %vm259 = vcmask 523264
  %v261 = vsel %vm259, %v219, 0
  %263 = vmatprep.subr.bf16.mxu0 0
  %264 = vmatpush1.bf16.msra.mxu0 %v251
  %265 = vmatprep.subr.bf16.mxu0 0
  %266 = vmatpush1.bf16.msra.mxu0 %v252
  %267 = vmatprep.subr.bf16.mxu0 0
  %268 = vmatpush1.bf16.msra.mxu0 %v253
  %269 = vmatprep.subr.bf16.mxu0 0
  %270 = vmatpush1.bf16.msra.mxu0 %v254
  %271 = vmatprep.subr.bf16.mxu0 0
  %272 = vmatpush1.bf16.msra.mxu0 0
  %273 = vmatprep.subr.bf16.mxu0 0
  %274 = vmatpush1.bf16.msra.mxu0 0
  %275 = vmatprep.subr.bf16.mxu0 0
  %276 = vmatpush1.bf16.msra.mxu0 0
  %277 = vmatprep.subr.bf16.mxu0 0
  %278 = vmatpush1.bf16.msra.mxu0 0
  %279 = vmatprep.subr.bf16.mxu0 0
  %280 = vmatpush1.bf16.msra.mxu0 0
  %281 = vmatprep.subr.bf16.mxu0 0
  %282 = vmatpush1.bf16.msra.mxu0 0
  %283 = vmatprep.subr.bf16.mxu0 0
  %284 = vmatpush1.bf16.msra.mxu0 0
  %285 = vmatprep.subr.bf16.mxu0 0
  %286 = vmatpush1.bf16.msra.mxu0 0
  %287 = vmatprep.subr.bf16.mxu0 0
  %288 = vmatpush1.bf16.msra.mxu0 0
  %289 = vmatprep.subr.bf16.mxu0 0
  %290 = vmatpush1.bf16.msra.mxu0 0
  %291 = vmatprep.subr.bf16.mxu0 0
  %292 = vmatpush1.bf16.msra.mxu0 0
  %293 = vmatprep.subr.bf16.mxu0 0
  %294 = vmatpush1.bf16.msra.mxu0 0
  %295 = vmatprep.mubr.bf16.mxu0 0
  %296 = vmatmul.mubr.bf16.gmra.mrb[0].mxu0 %v261
  %v297 = vpop.f32.mrb[0].mxu0
  %v298 = vadd.f32 %v233, %v297
  %v299 = vpop.f32.mrb[0].mxu0
  %v300 = vpop.f32.mrb[0].mxu0
  %v301 = vadd.f32 %v233, %v300
  %v302 = vpop.f32.mrb[0].mxu0
  %303 = vdwg.mxu0
  %304 = vst [vmem:[%s7] sm:$0xff] %v298
  %305 = vst [vmem:[%s7 + $0x8] sm:$0xff] %v301
  // Predicated region
  $region30: #{linear_embedding_classifier_forward.1} parent=0 // pred_check
    _
  $region31: #{linear_embedding_classifier_forward.1} parent=0 // pred_check_branch
    %307 = sbr.rel (0) target = $region33
  $region32: #{linear_embedding_classifier_forward.1} parent=0 // pred_region
    _
  $region33: #{linear_embedding_classifier_forward.1} parent=0 // pred_fallthru
    _
  // Predicated region
  $region34: #{linear_embedding_classifier_forward.1} parent=0 // pred_check
    _
  $region35: #{linear_embedding_classifier_forward.1} parent=0 // pred_check_branch
    %309 = sbr.rel (0) target = $region37
  $region36: #{linear_embedding_classifier_forward.1} parent=0 // pred_region
    _
  $region37: #{linear_embedding_classifier_forward.1} parent=0 // pred_fallthru
    _

</llo_original>
